<compile_context>
chip_gen: v5e
topology: v5e:2x2
jax: 0.10.0
libtpu: 0.0.40
codegen_flags: <defaults>
</compile_context>

<pallas_src>
import functools

import jax
import jax.numpy as jnp
from jax.experimental import pallas as pl
from jax.experimental.pallas import tpu as pltpu

_LN_EPS = 1e-5
_SUBLANE = 8


def _round_up(x, m):
    return ((x + m - 1) // m) * m


def _cdiv(a, b):
    return (a + b - 1) // b


# --------------------------------------------------------------------------- #
# Kernel
# --------------------------------------------------------------------------- #
def _make_deephead_kernel(num_layers):
    """Fused L-layer DeepHead kernel.

    Argument order: x_ref, (gamma, beta, w, bias) * L, out_ref.
    Feature dims are the true (unpadded) widths, so jnp.mean over the last axis
    is exact. Every op is row-independent, so a partial last batch tile is safe
    (garbage OOB rows produce garbage that is never written back).
    """

    def kernel(x_ref, *refs):
        param_refs = refs[:-1]
        o_ref = refs[-1]

        y = x_ref[...].astype(jnp.float32)          # (TB, D0), f32 working copy
        for li in range(num_layers):
            g_ref, b_ref, w_ref, bias_ref = param_refs[4 * li: 4 * li + 4]

            # LayerNorm (two-pass, biased variance, eps=1e-5) -- f32 VPU/XLU/EUP.
            mean = jnp.mean(y, axis=-1, keepdims=True)
            cen = y - mean
            var = jnp.mean(cen * cen, axis=-1, keepdims=True)
            y = cen * jax.lax.rsqrt(var + _LN_EPS)
            y = y * g_ref[...].astype(jnp.float32) + b_ref[...].astype(jnp.float32)

            # ReLU
            y = jnp.maximum(y, 0.0)

            # TODO(synk): training-mode dropout (p=0.2) not implemented (eval = identity).

            # Linear on the MXU: bf16 x bf16 -> f32 accumulation.
            w = w_ref[...]
            y = jnp.dot(y.astype(w.dtype), w, preferred_element_type=jnp.float32)
            y = y + bias_ref[...].astype(jnp.float32)

        o_ref[...] = y.astype(o_ref.dtype)

    return kernel


# --------------------------------------------------------------------------- #
# Wrapper
# --------------------------------------------------------------------------- #
@functools.partial(jax.jit, static_argnames=("dims", "tb"))
def deephead_forward(x, params, *, dims, tb=1024):
    """Fused DeepHead forward. x: (B, dims[0]) -> (B, dims[-1]).

    params: list of (gamma(1,Din), beta(1,Din), w(Din,Dout) bf16, bias(1,Dout))
    from `prepare_deephead_params`. `dims` is the dimension list (static).
    Output dtype follows x.dtype (pass bf16 x for bf16 kernel I/O).
    """
    B, D0 = x.shape
    assert D0 == dims[0]
    num_layers = len(dims) - 1
    d_last = dims[-1]

    # ---- batch tile ---------------------------------------------------------
    # Rows are independent -> tb only amortizes per-step overhead / tile DMA.
    # Sweep {512, 1024, 2048} for very large B. Clamp so the batch grid has at
    # least two tiles whenever B allows it (v7x: 2 TensorCores share the
    # "parallel" axis; a grid of 1 leaves one core idle).
    b8 = _round_up(B, _SUBLANE)
    tb = _round_up(min(max(tb, _SUBLANE), b8), _SUBLANE)
    if b8 >= 2 * _SUBLANE:
        tb = min(tb, _round_up(_cdiv(b8, 2), _SUBLANE))
    grid_b = _cdiv(B, tb)   # partial last tile allowed: OOB reads garbage, OOB writes dropped

    # ---- specs (true feature widths; block dim == full array dim is legal) ---
    in_specs = [pl.BlockSpec((tb, D0), lambda i: (i, 0))]
    flat_params = []
    for (g, be, wt, bb) in params:
        din = g.shape[1]
        dout = wt.shape[1]
        # Constant index_map -> Pallas DMAs these once and keeps them resident.
        # (For multi-MiB weights consider pipeline_mode=pl.Buffered(1) to halve
        #  their resident footprint -- irrelevant at these sizes.)
        in_specs += [
            pl.BlockSpec((1, din), lambda i: (0, 0)),
            pl.BlockSpec((1, din), lambda i: (0, 0)),
            pl.BlockSpec((din, dout), lambda i: (0, 0)),
            pl.BlockSpec((1, dout), lambda i: (0, 0)),
        ]
        flat_params += [g, be, wt, bb]

    out_spec = pl.BlockSpec((tb, d_last), lambda i: (i, 0))

    # ---- generation-aware VMEM budget ----------------------------------------
    try:
        vmem_cap = int(pltpu.get_tpu_info().vmem_capacity_bytes)
    except Exception:
        vmem_cap = 64 * 2**20                      # conservative (v7x-sized) fallback
    cap = (3 * vmem_cap) // 4                      # ~75% of physical VMEM

    itemsize = jnp.dtype(x.dtype).itemsize
    io_bytes = 2 * tb * (D0 + d_last) * itemsize   # double-buffered x / out tiles
    par_bytes = 2 * sum(a.size * jnp.dtype(a.dtype).itemsize
                        for t in params for a in t)
    act_bytes = 4 * tb * max(dims) * 4             # live f32 temporaries
    need = io_bytes + par_bytes + act_bytes
    vmem_limit = int(min(cap, max(32 * 2**20, 2 * need)))

    kernel = _make_deephead_kernel(num_layers)

    return pl.pallas_call(
        kernel,
        out_shape=jax.ShapeDtypeStruct((B, d_last), x.dtype),
        grid_spec=pltpu.PrefetchScalarGridSpec(
            num_scalar_prefetch=0,
            grid=(grid_b,),
            in_specs=in_specs,
            out_specs=out_spec,
        ),
        compiler_params=pltpu.CompilerParams(
            dimension_semantics=("parallel",),     # shards batch tiles across TCs
            vmem_limit_bytes=vmem_limit,
        ),
    )(x, *flat_params)


# --------------------------------------------------------------------------- #
# Parameter construction
# --------------------------------------------------------------------------- #
def init_deephead_params(key, dimensions):
    """Raw PyTorch-shaped params: (gamma(din,), beta(din,), w(dout,din), b(dout,))."""
    raw = []
    for i in range(len(dimensions) - 1):
        din, dout = dimensions[i], dimensions[i + 1]
        key, kw, kb = jax.random.split(key, 3)
        gamma = jnp.ones((din,), jnp.float32)
        beta = jnp.zeros((din,), jnp.float32)
        bound = 1.0 / (din ** 0.5)
        w = jax.random.uniform(kw, (dout, din), jnp.float32, -bound, bound)
        b = jax.random.uniform(kb, (dout,), jnp.float32, -bound, bound)
        raw.append((gamma, beta, w, b))
    return raw


def prepare_deephead_params(raw_params):
    """Transpose W to (Din, Dout) and cast matmul weights to bf16 (MXU operands).
    No feature padding: BlockSpecs use the true widths."""
    prepared = []
    for gamma, beta, w, b in raw_params:
        dout, din = w.shape
        prepared.append((gamma.reshape(1, din).astype(jnp.float32),
                         beta.reshape(1, din).astype(jnp.float32),
                         jnp.asarray(w.T, jnp.bfloat16),
                         b.reshape(1, dout).astype(jnp.float32)))
    return prepared


# --------------------------------------------------------------------------- #
# Pure-JAX references
# --------------------------------------------------------------------------- #
def deephead_forward_ref(x, raw_params, *, mirror_bf16):
    """Reference. mirror_bf16=True reproduces the kernel's bf16 matmul operands."""
    for gamma, beta, w, b in raw_params:
        mean = jnp.mean(x, axis=-1, keepdims=True)
        var = jnp.mean((x - mean) ** 2, axis=-1, keepdims=True)
        y = (x - mean) / jnp.sqrt(var + _LN_EPS) * gamma + beta
        y = jnp.maximum(y, 0.0)
        if mirror_bf16:
            x = jnp.dot(y.astype(jnp.bfloat16), w.T.astype(jnp.bfloat16),
                        preferred_element_type=jnp.float32) + b
        else:
            x = y @ w.T + b
    return x


# --------------------------------------------------------------------------- #
if __name__ == "__main__":
    key = jax.random.PRNGKey(0)
    dimensions = (32, 64, 16)   # DeepHead([32, 64, 16]) -> 2 fused LN->ReLU->Linear layers
    B = 13                      # not a multiple of the batch tile -> exercises the partial tail tile

    key, kx, kp = jax.random.split(key, 3)
    x = jax.random.normal(kx, (B, dimensions[0]), jnp.float32)

    raw_params = init_deephead_params(kp, dimensions)
    params = prepare_deephead_params(raw_params)

    out = deephead_forward(x, params, dims=dimensions, tb=1024)
    out = jax.block_until_ready(out)

    ref_mirror = deephead_forward_ref(x, raw_params, mirror_bf16=True)
    ref_f32 = deephead_forward_ref(x, raw_params, mirror_bf16=False)

    assert out.shape == (B, dimensions[-1])
    assert bool(jnp.all(jnp.isfinite(out))), "non-finite values in kernel output"
    assert jnp.allclose(out, ref_mirror, atol=1e-3, rtol=1e-3), "mismatch vs bf16-mirrored reference"
    assert jnp.allclose(out, ref_f32, atol=3e-2, rtol=3e-2), "mismatch vs f32 reference"

    print("KERNEL_OK")
</pallas_src>

<mosaic_0001>
module attributes {stable_mosaic.version = 11 : i64} {
  func.func @kernel(%arg0: i32, %arg1: memref<8x32xf32, #tpu.memory_space<vmem>>, %arg2: memref<1x32xf32, #tpu.memory_space<vmem>>, %arg3: memref<1x32xf32, #tpu.memory_space<vmem>>, %arg4: memref<32x64xbf16, #tpu.memory_space<vmem>>, %arg5: memref<1x64xf32, #tpu.memory_space<vmem>>, %arg6: memref<1x64xf32, #tpu.memory_space<vmem>>, %arg7: memref<1x64xf32, #tpu.memory_space<vmem>>, %arg8: memref<64x16xbf16, #tpu.memory_space<vmem>>, %arg9: memref<1x16xf32, #tpu.memory_space<vmem>>, %arg10: memref<8x16xf32, #tpu.memory_space<vmem>>) attributes {dimension_semantics = [#tpu.dimension_semantics<parallel>], iteration_bounds = array<i64: 2>, scalar_prefetch = 0 : i64, scratch_operands = 0 : i64, tpu.core_type = #tpu.core_type<tc>, window_params = [{transform_indices = @transform_0, window_bounds = array<i64: 8, 32>}, {pipeline_mode = #tpu.pipeline_mode<synchronous>, transform_indices = @transform_1, window_bounds = array<i64: 1, 32>}, {pipeline_mode = #tpu.pipeline_mode<synchronous>, transform_indices = @transform_2, window_bounds = array<i64: 1, 32>}, {pipeline_mode = #tpu.pipeline_mode<synchronous>, transform_indices = @transform_3, window_bounds = array<i64: 32, 64>}, {pipeline_mode = #tpu.pipeline_mode<synchronous>, transform_indices = @transform_4, window_bounds = array<i64: 1, 64>}, {pipeline_mode = #tpu.pipeline_mode<synchronous>, transform_indices = @transform_5, window_bounds = array<i64: 1, 64>}, {pipeline_mode = #tpu.pipeline_mode<synchronous>, transform_indices = @transform_6, window_bounds = array<i64: 1, 64>}, {pipeline_mode = #tpu.pipeline_mode<synchronous>, transform_indices = @transform_7, window_bounds = array<i64: 64, 16>}, {pipeline_mode = #tpu.pipeline_mode<synchronous>, transform_indices = @transform_8, window_bounds = array<i64: 1, 16>}, {transform_indices = @transform_9, window_bounds = array<i64: 8, 16>}]} {
    %c0 = arith.constant 0 : index
    %c0_0 = arith.constant 0 : index
    %0 = vector.load %arg1[%c0, %c0_0] : memref<8x32xf32, #tpu.memory_space<vmem>>, vector<8x32xf32>
    %cst = arith.constant dense<0.000000e+00> : vector<8xf32>
    %1 = vector.multi_reduction <add>, %0, %cst [1] : vector<8x32xf32> to vector<8xf32>
    %2 = vector.shape_cast %1 : vector<8xf32> to vector<8x1xf32>
    %cst_1 = arith.constant 3.200000e+01 : f32
    %3 = vector.broadcast %cst_1 : f32 to vector<8x1xf32>
    %4 = arith.divf %2, %3 : vector<8x1xf32>
    %5 = vector.broadcast %4 : vector<8x1xf32> to vector<8x32xf32>
    %6 = arith.subf %0, %5 : vector<8x32xf32>
    %7 = arith.mulf %6, %6 : vector<8x32xf32>
    %cst_2 = arith.constant dense<0.000000e+00> : vector<8xf32>
    %8 = vector.multi_reduction <add>, %7, %cst_2 [1] : vector<8x32xf32> to vector<8xf32>
    %9 = vector.shape_cast %8 : vector<8xf32> to vector<8x1xf32>
    %cst_3 = arith.constant 3.200000e+01 : f32
    %10 = vector.broadcast %cst_3 : f32 to vector<8x1xf32>
    %11 = arith.divf %9, %10 : vector<8x1xf32>
    %cst_4 = arith.constant 9.99999974E-6 : f32
    %12 = vector.broadcast %cst_4 : f32 to vector<8x1xf32>
    %13 = arith.addf %11, %12 : vector<8x1xf32>
    %14 = math.rsqrt %13 : vector<8x1xf32>
    %15 = vector.broadcast %14 : vector<8x1xf32> to vector<8x32xf32>
    %16 = arith.mulf %6, %15 : vector<8x32xf32>
    %c0_5 = arith.constant 0 : index
    %c0_6 = arith.constant 0 : index
    %17 = vector.load %arg2[%c0_5, %c0_6] : memref<1x32xf32, #tpu.memory_space<vmem>>, vector<1x32xf32>
    %18 = vector.broadcast %17 : vector<1x32xf32> to vector<8x32xf32>
    %19 = arith.mulf %16, %18 : vector<8x32xf32>
    %c0_7 = arith.constant 0 : index
    %c0_8 = arith.constant 0 : index
    %20 = vector.load %arg3[%c0_7, %c0_8] : memref<1x32xf32, #tpu.memory_space<vmem>>, vector<1x32xf32>
    %21 = vector.broadcast %20 : vector<1x32xf32> to vector<8x32xf32>
    %22 = arith.addf %19, %21 : vector<8x32xf32>
    %cst_9 = arith.constant 0.000000e+00 : f32
    %23 = vector.broadcast %cst_9 : f32 to vector<8x32xf32>
    %24 = arith.maximumf %22, %23 : vector<8x32xf32>
    %c0_10 = arith.constant 0 : index
    %c0_11 = arith.constant 0 : index
    %25 = vector.load %arg4[%c0_10, %c0_11] : memref<32x64xbf16, #tpu.memory_space<vmem>>, vector<32x64xbf16>
    %26 = arith.truncf %24 : vector<8x32xf32> to vector<8x32xbf16>
    %cst_12 = arith.constant dense<0.000000e+00> : vector<8x64xf32>
    %27 = tpu.matmul %26, %25, %cst_12 {dimension_numbers = #tpu.dot_dimension_numbers<[1], [0], [0], [1], [0, 0, 1, 1], [], []>} : vector<8x32xbf16>, vector<32x64xbf16>, vector<8x64xf32> -> vector<8x64xf32>
    %c0_13 = arith.constant 0 : index
    %c0_14 = arith.constant 0 : index
    %28 = vector.load %arg5[%c0_13, %c0_14] : memref<1x64xf32, #tpu.memory_space<vmem>>, vector<1x64xf32>
    %29 = vector.broadcast %28 : vector<1x64xf32> to vector<8x64xf32>
    %30 = arith.addf %27, %29 : vector<8x64xf32>
    %cst_15 = arith.constant dense<0.000000e+00> : vector<8xf32>
    %31 = vector.multi_reduction <add>, %30, %cst_15 [1] : vector<8x64xf32> to vector<8xf32>
    %32 = vector.shape_cast %31 : vector<8xf32> to vector<8x1xf32>
    %cst_16 = arith.constant 6.400000e+01 : f32
    %33 = vector.broadcast %cst_16 : f32 to vector<8x1xf32>
    %34 = arith.divf %32, %33 : vector<8x1xf32>
    %35 = vector.broadcast %34 : vector<8x1xf32> to vector<8x64xf32>
    %36 = arith.subf %30, %35 : vector<8x64xf32>
    %37 = arith.mulf %36, %36 : vector<8x64xf32>
    %cst_17 = arith.constant dense<0.000000e+00> : vector<8xf32>
    %38 = vector.multi_reduction <add>, %37, %cst_17 [1] : vector<8x64xf32> to vector<8xf32>
    %39 = vector.shape_cast %38 : vector<8xf32> to vector<8x1xf32>
    %cst_18 = arith.constant 6.400000e+01 : f32
    %40 = vector.broadcast %cst_18 : f32 to vector<8x1xf32>
    %41 = arith.divf %39, %40 : vector<8x1xf32>
    %cst_19 = arith.constant 9.99999974E-6 : f32
    %42 = vector.broadcast %cst_19 : f32 to vector<8x1xf32>
    %43 = arith.addf %41, %42 : vector<8x1xf32>
    %44 = math.rsqrt %43 : vector<8x1xf32>
    %45 = vector.broadcast %44 : vector<8x1xf32> to vector<8x64xf32>
    %46 = arith.mulf %36, %45 : vector<8x64xf32>
    %c0_20 = arith.constant 0 : index
    %c0_21 = arith.constant 0 : index
    %47 = vector.load %arg6[%c0_20, %c0_21] : memref<1x64xf32, #tpu.memory_space<vmem>>, vector<1x64xf32>
    %48 = vector.broadcast %47 : vector<1x64xf32> to vector<8x64xf32>
    %49 = arith.mulf %46, %48 : vector<8x64xf32>
    %c0_22 = arith.constant 0 : index
    %c0_23 = arith.constant 0 : index
    %50 = vector.load %arg7[%c0_22, %c0_23] : memref<1x64xf32, #tpu.memory_space<vmem>>, vector<1x64xf32>
    %51 = vector.broadcast %50 : vector<1x64xf32> to vector<8x64xf32>
    %52 = arith.addf %49, %51 : vector<8x64xf32>
    %cst_24 = arith.constant 0.000000e+00 : f32
    %53 = vector.broadcast %cst_24 : f32 to vector<8x64xf32>
    %54 = arith.maximumf %52, %53 : vector<8x64xf32>
    %c0_25 = arith.constant 0 : index
    %c0_26 = arith.constant 0 : index
    %55 = vector.load %arg8[%c0_25, %c0_26] : memref<64x16xbf16, #tpu.memory_space<vmem>>, vector<64x16xbf16>
    %56 = arith.truncf %54 : vector<8x64xf32> to vector<8x64xbf16>
    %cst_27 = arith.constant dense<0.000000e+00> : vector<8x16xf32>
    %57 = tpu.matmul %56, %55, %cst_27 {dimension_numbers = #tpu.dot_dimension_numbers<[1], [0], [0], [1], [0, 0, 1, 1], [], []>} : vector<8x64xbf16>, vector<64x16xbf16>, vector<8x16xf32> -> vector<8x16xf32>
    %c0_28 = arith.constant 0 : index
    %c0_29 = arith.constant 0 : index
    %58 = vector.load %arg9[%c0_28, %c0_29] : memref<1x16xf32, #tpu.memory_space<vmem>>, vector<1x16xf32>
    %59 = vector.broadcast %58 : vector<1x16xf32> to vector<8x16xf32>
    %60 = arith.addf %57, %59 : vector<8x16xf32>
    %c0_30 = arith.constant 0 : index
    %c0_31 = arith.constant 0 : index
    %61 = vector.load %arg10[%c0_30, %c0_31] : memref<8x16xf32, #tpu.memory_space<vmem>>, vector<8x16xf32>
    tpu.vector_store %arg10[%c0_30, %c0_31], %60 {strides = array<i32>} : memref<8x16xf32, #tpu.memory_space<vmem>>, vector<8x16xf32>,
    return
  }
  func.func @transform_0(%arg0: i32) -> (i32, i32) {
    %c0_i32 = arith.constant 0 : i32
    %c0_i32_0 = arith.constant 0 : i32
    return %arg0, %c0_i32 : i32, i32
  }
  func.func @transform_1(%arg0: i32) -> (i32, i32) {
    %c0_i32 = arith.constant 0 : i32
    %c0_i32_0 = arith.constant 0 : i32
    %c0_i32_1 = arith.constant 0 : i32
    return %c0_i32, %c0_i32_0 : i32, i32
  }
  func.func @transform_2(%arg0: i32) -> (i32, i32) {
    %c0_i32 = arith.constant 0 : i32
    %c0_i32_0 = arith.constant 0 : i32
    %c0_i32_1 = arith.constant 0 : i32
    return %c0_i32, %c0_i32_0 : i32, i32
  }
  func.func @transform_3(%arg0: i32) -> (i32, i32) {
    %c0_i32 = arith.constant 0 : i32
    %c0_i32_0 = arith.constant 0 : i32
    %c0_i32_1 = arith.constant 0 : i32
    return %c0_i32, %c0_i32_0 : i32, i32
  }
  func.func @transform_4(%arg0: i32) -> (i32, i32) {
    %c0_i32 = arith.constant 0 : i32
    %c0_i32_0 = arith.constant 0 : i32
    %c0_i32_1 = arith.constant 0 : i32
    return %c0_i32, %c0_i32_0 : i32, i32
  }
  func.func @transform_5(%arg0: i32) -> (i32, i32) {
    %c0_i32 = arith.constant 0 : i32
    %c0_i32_0 = arith.constant 0 : i32
    %c0_i32_1 = arith.constant 0 : i32
    return %c0_i32, %c0_i32_0 : i32, i32
  }
  func.func @transform_6(%arg0: i32) -> (i32, i32) {
    %c0_i32 = arith.constant 0 : i32
    %c0_i32_0 = arith.constant 0 : i32
    %c0_i32_1 = arith.constant 0 : i32
    return %c0_i32, %c0_i32_0 : i32, i32
  }
  func.func @transform_7(%arg0: i32) -> (i32, i32) {
    %c0_i32 = arith.constant 0 : i32
    %c0_i32_0 = arith.constant 0 : i32
    %c0_i32_1 = arith.constant 0 : i32
    return %c0_i32, %c0_i32_0 : i32, i32
  }
  func.func @transform_8(%arg0: i32) -> (i32, i32) {
    %c0_i32 = arith.constant 0 : i32
    %c0_i32_0 = arith.constant 0 : i32
    %c0_i32_1 = arith.constant 0 : i32
    return %c0_i32, %c0_i32_0 : i32, i32
  }
  func.func @transform_9(%arg0: i32) -> (i32, i32) {
    %c0_i32 = arith.constant 0 : i32
    %c0_i32_0 = arith.constant 0 : i32
    return %arg0, %c0_i32 : i32, i32
  }
}

</mosaic_0001>

<llo_original>
// kernel: deephead_forward.1
$region0: #{deephead_forward.1}
  #allocation0 [shape = 'u32[]', space=smem, size = 0x4, offset = 0x4, fixed_abs, tag = 'smem constant byte address 0x4 - core index']
  #allocation1 [shape = 'u32[72,128]{1,0:T(1,128)}', space=vmem, size = 0x9000, scoped, tag = 'internal scratch']
  %s0 = inlined_call_operand.vmem [shape: f32[13,32], index: 0, kind: input, shape index: {}]
  %s1 = inlined_call_operand.vmem [shape: f32[1,32], index: 1, kind: input, shape index: {}]
  %s2 = inlined_call_operand.vmem [shape: f32[1,32], index: 2, kind: input, shape index: {}]
  %s3 = inlined_call_operand.vmem [shape: bf16[32,64], index: 3, kind: input, shape index: {}]
  %s4 = inlined_call_operand.vmem [shape: f32[1,64], index: 4, kind: input, shape index: {}]
  %s5 = inlined_call_operand.vmem [shape: f32[1,64], index: 5, kind: input, shape index: {}]
  %s6 = inlined_call_operand.vmem [shape: f32[1,64], index: 6, kind: input, shape index: {}]
  %s7 = inlined_call_operand.vmem [shape: bf16[64,16], index: 7, kind: input, shape index: {}]
  %s8 = inlined_call_operand.vmem [shape: f32[1,16], index: 8, kind: input, shape index: {}]
  %s9 = inlined_call_operand.hbm [shape: f32[13,16], index: 9, kind: output, shape index: {}]
  %s10 = sld [smem:[#allocation0]]
  $region69: #{deephead_forward.1} parent=0
    _
  %s12 = ssub.s32 1, %s10
  %s13 = scalar_select 0, %s12, %s10
  $region1: #{deephead_forward.1} parent=0
    #allocation2 [shape = 'u8[8192]{0}', space=vmem, size = 0x2000, scoped, tag = 'output window, operand 0']
    #allocation3 [shape = 's32[2]{0}', space=sflag, size = 0x8, scoped, tag = 'scoped memory for deephead_forward.1']
    %14 = vsyncpa [#allocation3], 0
    %s15 = scalar_lea.sflag [#allocation3], 1
    %16 = vsyncpa %s15, 0
    loop: start=0, step=1, limit=4
    $region2: #{deephead_forward.1} parent=1 // loop_pre_header
      _
    $region3: #{deephead_forward.1} parent=1 // loop_header
      %s18 = sphi 0, %s22
      %p19 = scmp.ge.s32.totalorder %s18, 4
      %s28 = sphi 0, %s30
      %s31 = sphi 0, %s28
      %s32 = sphi 0, %s31
      %s48 = sphi 0, %s32
      %s52 = sphi 0, %s52
      %s54 = sphi 0, %s52
      %s55 = sphi 0, %s54
      %s69 = sphi 0, %s55
      %s73 = sphi 0, %s73
      %s75 = sphi 0, %s73
      %s76 = sphi 0, %s75
      %s90 = sphi 0, %s76
      %s94 = sphi 0, %s94
      %s96 = sphi 0, %s94
      %s97 = sphi 0, %s96
      %s111 = sphi 0, %s97
      %s115 = sphi 0, %s115
      %s117 = sphi 0, %s115
      %s118 = sphi 0, %s117
      %s132 = sphi 0, %s118
      %s136 = sphi 0, %s136
      %s138 = sphi 0, %s136
      %s139 = sphi 0, %s138
      %s153 = sphi 0, %s139
      %s157 = sphi 0, %s157
      %s159 = sphi 0, %s157
      %s160 = sphi 0, %s159
      %s174 = sphi 0, %s160
      %s178 = sphi 0, %s178
      %s180 = sphi 0, %s178
      %s181 = sphi 0, %s180
      %s195 = sphi 0, %s181
      %s199 = sphi 0, %s199
      %s201 = sphi 0, %s199
      %s202 = sphi 0, %s201
      %s216 = sphi 0, %s202
      %s222 = sphi 0, %s224
      %s225 = sphi 0, %s222
      %s226 = sphi 0, %s225
      %s242 = sphi 0, %s226
    $region4: #{deephead_forward.1} parent=1 // loop_header_branch
      %21 = sbr.rel (%p19) target = $region8
    $region5: #{deephead_forward.1} parent=1 // loop_body
      %s23 = ssub.s32 %s18, 1
      %s24 = ssub.s32 %s18, 2
      %s25 = sadd.s32 %s18, 1
      %s26 = ssub.s32 %s18, %s25
      %p27 = scmp.eq.s32.totalorder %s26, 0
      %s29 = sadd.s32 %s28, 1
      %s30 = scalar_select %p27, %s28, %s29
      %p33 = pneg %p27
      %p34 = scmp.eq.s32.totalorder %s18, 1
      %p35 = por %p33, %p34
      %p36 = scmp.ne.s32.totalorder %s28, %s31
      %p37 = scmp.eq.s32.totalorder %s18, 0
      %p38 = por %p36, %p37
      %p39 = scmp.ne.s32.totalorder %s28, %s31
      %p40 = scmp.eq.s32.totalorder %s23, 1
      %p41 = por %p39, %p40
      %p42 = scmp.ne.s32.totalorder %s31, %s32
      %p43 = scmp.eq.s32.totalorder %s23, 0
      %p44 = por %p42, %p43
      %p45 = scmp.ne.s32.totalorder %s31, %s32
      %p46 = scmp.eq.s32.totalorder %s24, 1
      %p47 = por %p45, %p46
      %p49 = scmp.ne.s32.totalorder %s32, %s48
      %p50 = scmp.eq.s32.totalorder %s24, 0
      %p51 = por %p49, %p50
      %s53 = sadd.s32 %s52, 1
      %p56 = scmp.eq.s32.totalorder %s18, 1
      %p57 = scmp.ne.s32.totalorder %s52, %s54
      %p58 = scmp.eq.s32.totalorder %s18, 0
      %p59 = por %p57, %p58
      %p60 = scmp.ne.s32.totalorder %s52, %s54
      %p61 = scmp.eq.s32.totalorder %s23, 1
      %p62 = por %p60, %p61
      %p63 = scmp.ne.s32.totalorder %s54, %s55
      %p64 = scmp.eq.s32.totalorder %s23, 0
      %p65 = por %p63, %p64
      %p66 = scmp.ne.s32.totalorder %s54, %s55
      %p67 = scmp.eq.s32.totalorder %s24, 1
      %p68 = por %p66, %p67
      %p70 = scmp.ne.s32.totalorder %s55, %s69
      %p71 = scmp.eq.s32.totalorder %s24, 0
      %p72 = por %p70, %p71
      %s74 = sadd.s32 %s73, 1
      %p77 = scmp.eq.s32.totalorder %s18, 1
      %p78 = scmp.ne.s32.totalorder %s73, %s75
      %p79 = scmp.eq.s32.totalorder %s18, 0
      %p80 = por %p78, %p79
      %p81 = scmp.ne.s32.totalorder %s73, %s75
      %p82 = scmp.eq.s32.totalorder %s23, 1
      %p83 = por %p81, %p82
      %p84 = scmp.ne.s32.totalorder %s75, %s76
      %p85 = scmp.eq.s32.totalorder %s23, 0
      %p86 = por %p84, %p85
      %p87 = scmp.ne.s32.totalorder %s75, %s76
      %p88 = scmp.eq.s32.totalorder %s24, 1
      %p89 = por %p87, %p88
      %p91 = scmp.ne.s32.totalorder %s76, %s90
      %p92 = scmp.eq.s32.totalorder %s24, 0
      %p93 = por %p91, %p92
      %s95 = sadd.s32 %s94, 1
      %p98 = scmp.eq.s32.totalorder %s18, 1
      %p99 = scmp.ne.s32.totalorder %s94, %s96
      %p100 = scmp.eq.s32.totalorder %s18, 0
      %p101 = por %p99, %p100
      %p102 = scmp.ne.s32.totalorder %s94, %s96
      %p103 = scmp.eq.s32.totalorder %s23, 1
      %p104 = por %p102, %p103
      %p105 = scmp.ne.s32.totalorder %s96, %s97
      %p106 = scmp.eq.s32.totalorder %s23, 0
      %p107 = por %p105, %p106
      %p108 = scmp.ne.s32.totalorder %s96, %s97
      %p109 = scmp.eq.s32.totalorder %s24, 1
      %p110 = por %p108, %p109
      %p112 = scmp.ne.s32.totalorder %s97, %s111
      %p113 = scmp.eq.s32.totalorder %s24, 0
      %p114 = por %p112, %p113
      %s116 = sadd.s32 %s115, 1
      %p119 = scmp.eq.s32.totalorder %s18, 1
      %p120 = scmp.ne.s32.totalorder %s115, %s117
      %p121 = scmp.eq.s32.totalorder %s18, 0
      %p122 = por %p120, %p121
      %p123 = scmp.ne.s32.totalorder %s115, %s117
      %p124 = scmp.eq.s32.totalorder %s23, 1
      %p125 = por %p123, %p124
      %p126 = scmp.ne.s32.totalorder %s117, %s118
      %p127 = scmp.eq.s32.totalorder %s23, 0
      %p128 = por %p126, %p127
      %p129 = scmp.ne.s32.totalorder %s117, %s118
      %p130 = scmp.eq.s32.totalorder %s24, 1
      %p131 = por %p129, %p130
      %p133 = scmp.ne.s32.totalorder %s118, %s132
      %p134 = scmp.eq.s32.totalorder %s24, 0
      %p135 = por %p133, %p134
      %s137 = sadd.s32 %s136, 1
      %p140 = scmp.eq.s32.totalorder %s18, 1
      %p141 = scmp.ne.s32.totalorder %s136, %s138
      %p142 = scmp.eq.s32.totalorder %s18, 0
      %p143 = por %p141, %p142
      %p144 = scmp.ne.s32.totalorder %s136, %s138
      %p145 = scmp.eq.s32.totalorder %s23, 1
      %p146 = por %p144, %p145
      %p147 = scmp.ne.s32.totalorder %s138, %s139
      %p148 = scmp.eq.s32.totalorder %s23, 0
      %p149 = por %p147, %p148
      %p150 = scmp.ne.s32.totalorder %s138, %s139
      %p151 = scmp.eq.s32.totalorder %s24, 1
      %p152 = por %p150, %p151
      %p154 = scmp.ne.s32.totalorder %s139, %s153
      %p155 = scmp.eq.s32.totalorder %s24, 0
      %p156 = por %p154, %p155
      %s158 = sadd.s32 %s157, 1
      %p161 = scmp.eq.s32.totalorder %s18, 1
      %p162 = scmp.ne.s32.totalorder %s157, %s159
      %p163 = scmp.eq.s32.totalorder %s18, 0
      %p164 = por %p162, %p163
      %p165 = scmp.ne.s32.totalorder %s157, %s159
      %p166 = scmp.eq.s32.totalorder %s23, 1
      %p167 = por %p165, %p166
      %p168 = scmp.ne.s32.totalorder %s159, %s160
      %p169 = scmp.eq.s32.totalorder %s23, 0
      %p170 = por %p168, %p169
      %p171 = scmp.ne.s32.totalorder %s159, %s160
      %p172 = scmp.eq.s32.totalorder %s24, 1
      %p173 = por %p171, %p172
      %p175 = scmp.ne.s32.totalorder %s160, %s174
      %p176 = scmp.eq.s32.totalorder %s24, 0
      %p177 = por %p175, %p176
      %s179 = sadd.s32 %s178, 1
      %p182 = scmp.eq.s32.totalorder %s18, 1
      %p183 = scmp.ne.s32.totalorder %s178, %s180
      %p184 = scmp.eq.s32.totalorder %s18, 0
      %p185 = por %p183, %p184
      %p186 = scmp.ne.s32.totalorder %s178, %s180
      %p187 = scmp.eq.s32.totalorder %s23, 1
      %p188 = por %p186, %p187
      %p189 = scmp.ne.s32.totalorder %s180, %s181
      %p190 = scmp.eq.s32.totalorder %s23, 0
      %p191 = por %p189, %p190
      %p192 = scmp.ne.s32.totalorder %s180, %s181
      %p193 = scmp.eq.s32.totalorder %s24, 1
      %p194 = por %p192, %p193
      %p196 = scmp.ne.s32.totalorder %s181, %s195
      %p197 = scmp.eq.s32.totalorder %s24, 0
      %p198 = por %p196, %p197
      %s200 = sadd.s32 %s199, 1
      %p203 = scmp.eq.s32.totalorder %s18, 1
      %p204 = scmp.ne.s32.totalorder %s199, %s201
      %p205 = scmp.eq.s32.totalorder %s18, 0
      %p206 = por %p204, %p205
      %p207 = scmp.ne.s32.totalorder %s199, %s201
      %p208 = scmp.eq.s32.totalorder %s23, 1
      %p209 = por %p207, %p208
      %p210 = scmp.ne.s32.totalorder %s201, %s202
      %p211 = scmp.eq.s32.totalorder %s23, 0
      %p212 = por %p210, %p211
      %p213 = scmp.ne.s32.totalorder %s201, %s202
      %p214 = scmp.eq.s32.totalorder %s24, 1
      %p215 = por %p213, %p214
      %p217 = scmp.ne.s32.totalorder %s202, %s216
      %p218 = scmp.eq.s32.totalorder %s24, 0
      %p219 = por %p217, %p218
      %s220 = ssub.s32 %s18, %s25
      %p221 = scmp.eq.s32.totalorder %s220, 0
      %s223 = sadd.s32 %s222, 1
      %s224 = scalar_select %p221, %s222, %s223
      %p227 = pneg %p221
      %p228 = scmp.eq.s32.totalorder %s18, 1
      %p229 = por %p227, %p228
      %p230 = scmp.ne.s32.totalorder %s222, %s225
      %p231 = scmp.eq.s32.totalorder %s18, 0
      %p232 = por %p230, %p231
      %p233 = scmp.ne.s32.totalorder %s222, %s225
      %p234 = scmp.eq.s32.totalorder %s23, 1
      %p235 = por %p233, %p234
      %p236 = scmp.ne.s32.totalorder %s225, %s226
      %p237 = scmp.eq.s32.totalorder %s23, 0
      %p238 = por %p236, %p237
      %p239 = scmp.ne.s32.totalorder %s225, %s226
      %p240 = scmp.eq.s32.totalorder %s24, 1
      %p241 = por %p239, %p240
      %p243 = scmp.ne.s32.totalorder %s226, %s242
      %p244 = scmp.eq.s32.totalorder %s24, 0
      %p245 = por %p243, %p244
      %p246 = scmp.le.s32.totalorder 1, %s18
      %p247 = scmp.lt.s32.totalorder %s18, 3
      %p248 = pnand %p246, %p247
      %p249 = pneg %p248
      // Predicated region
      $region9: #{deephead_forward.1} parent=5 // pred_check
        _
      $region10: #{deephead_forward.1} parent=5 // pred_check_branch
        %251 = sbr.rel (%p248) target = $region12
      $region11: #{deephead_forward.1} parent=5 // pred_region
        %s252 = ssub.s32 %s18, 1
        // Predicated region
        $region13: #{deephead_forward.1} parent=11 // pred_check
          %p253 = pneg %p65
        $region14: #{deephead_forward.1} parent=11 // pred_check_branch
          %255 = sbr.rel (%p253) target = $region16
        $region15: #{deephead_forward.1} parent=11 // pred_region
          _
        $region16: #{deephead_forward.1} parent=11 // pred_fallthru
          _
        // Predicated region
        $region17: #{deephead_forward.1} parent=11 // pred_check
          %p256 = pneg %p86
        $region18: #{deephead_forward.1} parent=11 // pred_check_branch
          %258 = sbr.rel (%p256) target = $region20
        $region19: #{deephead_forward.1} parent=11 // pred_region
          _
        $region20: #{deephead_forward.1} parent=11 // pred_fallthru
          _
        // Predicated region
        $region21: #{deephead_forward.1} parent=11 // pred_check
          %p259 = pneg %p107
        $region22: #{deephead_forward.1} parent=11 // pred_check_branch
          %261 = sbr.rel (%p259) target = $region24
        $region23: #{deephead_forward.1} parent=11 // pred_region
          _
        $region24: #{deephead_forward.1} parent=11 // pred_fallthru
          _
        // Predicated region
        $region25: #{deephead_forward.1} parent=11 // pred_check
          %p262 = pneg %p128
        $region26: #{deephead_forward.1} parent=11 // pred_check_branch
          %264 = sbr.rel (%p262) target = $region28
        $region27: #{deephead_forward.1} parent=11 // pred_region
          _
        $region28: #{deephead_forward.1} parent=11 // pred_fallthru
          _
        // Predicated region
        $region29: #{deephead_forward.1} parent=11 // pred_check
          %p265 = pneg %p149
        $region30: #{deephead_forward.1} parent=11 // pred_check_branch
          %267 = sbr.rel (%p265) target = $region32
        $region31: #{deephead_forward.1} parent=11 // pred_region
          _
        $region32: #{deephead_forward.1} parent=11 // pred_fallthru
          _
        // Predicated region
        $region33: #{deephead_forward.1} parent=11 // pred_check
          %p268 = pneg %p170
        $region34: #{deephead_forward.1} parent=11 // pred_check_branch
          %270 = sbr.rel (%p268) target = $region36
        $region35: #{deephead_forward.1} parent=11 // pred_region
          _
        $region36: #{deephead_forward.1} parent=11 // pred_fallthru
          _
        // Predicated region
        $region37: #{deephead_forward.1} parent=11 // pred_check
          %p271 = pneg %p191
        $region38: #{deephead_forward.1} parent=11 // pred_check_branch
          %273 = sbr.rel (%p271) target = $region40
        $region39: #{deephead_forward.1} parent=11 // pred_region
          _
        $region40: #{deephead_forward.1} parent=11 // pred_fallthru
          _
        // Predicated region
        $region41: #{deephead_forward.1} parent=11 // pred_check
          %p274 = pneg %p212
        $region42: #{deephead_forward.1} parent=11 // pred_check_branch
          %276 = sbr.rel (%p274) target = $region44
        $region43: #{deephead_forward.1} parent=11 // pred_region
          _
        $region44: #{deephead_forward.1} parent=11 // pred_fallthru
          _
      $region12: #{deephead_forward.1} parent=5 // pred_fallthru
        _
      %p277 = scmp.lt.s32.totalorder %s18, 2
      // Predicated region
      $region45: #{deephead_forward.1} parent=5 // pred_check
        %p278 = pneg %p277
      $region46: #{deephead_forward.1} parent=5 // pred_check_branch
        %280 = sbr.rel (%p278) target = $region48
      $region47: #{deephead_forward.1} parent=5 // pred_region
        // Predicated region
        $region49: #{deephead_forward.1} parent=47 // pred_check
          %p281 = pneg %p38
        $region50: #{deephead_forward.1} parent=47 // pred_check_branch
          %283 = sbr.rel (%p281) target = $region52
        $region51: #{deephead_forward.1} parent=47 // pred_region
          %p284 = scmp.lt.s32.totalorder %s18, 1
          %s285 = scalar_select %p284, %s18, 1
          %s286 = smul.addr %s285, 8
          %s287 = scalar_lea.vmem %s0, %s286
        $region52: #{deephead_forward.1} parent=47 // pred_fallthru
          _
      $region48: #{deephead_forward.1} parent=5 // pred_fallthru
        _
      %p288 = scmp.le.s32.totalorder 1, %s18
      %p289 = scmp.lt.s32.totalorder %s18, 3
      %p290 = pnand %p288, %p289
      %p291 = pneg %p290
      // Predicated region
      $region53: #{deephead_forward.1} parent=5 // pred_check
        _
      $region54: #{deephead_forward.1} parent=5 // pred_check_branch
        %293 = sbr.rel (%p290) target = $region56
      $region55: #{deephead_forward.1} parent=5 // pred_region
        %s294 = ssub.s32 %s18, 1
        %p295 = scmp.lt.s32.totalorder %s23, 1
        %s296 = scalar_select %p295, %s23, 1
        %s297 = smul.addr %s296, 8
        %s298 = scalar_lea.vmem %s0, %s297
        %p299 = pneg %p44
        %p300 = pneg %p41
        %p301 = pneg %p65
        %p302 = pneg %p62
        %p303 = pneg %p86
        %p304 = pneg %p83
        %p305 = pneg %p107
        %p306 = pneg %p104
        %p307 = pneg %p128
        %p308 = pneg %p125
        %p309 = pneg %p149
        %p310 = pneg %p146
        %p311 = pneg %p170
        %p312 = pneg %p167
        %p313 = pneg %p191
        %p314 = pneg %p188
        %p315 = pneg %p212
        %p316 = pneg %p209
        %p317 = pneg %p238
        %p318 = pneg %p235
        %s319 = sand.u32 %s225, 1
        %s320 = scalar_lea.sflag [#allocation3], %s319
        %s321 = sand.u32 %s225, 1
        %s322 = smul.addr %s321, 8
        %s323 = scalar_lea.vmem [#allocation2], %s322
        %p324 = scmp.lt.s32.totalorder %s23, 1
        %s325 = scalar_select %p324, %s23, 1
        %s326 = smul.addr %s325, 8
        %s327 = scalar_lea.vmem %s0, %s326
        %v329 = vld [vmem:[%s327] sm:$0xff]
        %vm330 = vcmask 261120
        %v331 = vsel %vm330, %v329, 0.0
        %332 = vadd.xlane.f32.xlu0 %v331
        %v333 = vpop.xlane.xlu0 %332
        %v334 = vrcp.pop 32.0
        %v335 = vmul.f32 32.0, %v334
        %v336 = vsub.f32 1.0, %v335
        %v337 = vmul.f32 %v334, %v336
        %v338 = vadd.f32 %v334, %v337
        %vm339 = vweird.f32 %v334
        %v340 = vsel %vm339, %v334, %v338
        %v341 = vmul.f32 %v333, %v340
        %v342 = vsub.f32 %v329, %v341
        %v343 = vmul.f32 %v342, %v342
        %v344 = vsel %vm330, %v343, 0.0
        %345 = vadd.xlane.f32.xlu0 %v344
        %v346 = vpop.xlane.xlu0 %345
        %v347 = vmul.f32 %v346, %v340
        %v348 = vadd.f32 %v347, 1e-05
        %v349 = vrsqrt.pop %v348
        %v350 = vmul.f32 %v349, %v348
        %v351 = vmul.f32 %v350, %v349
        %v352 = vmul.f32 0.5, %v351
        %v353 = vsub.f32 1.5, %v352
        %v354 = vmul.f32 %v349, %v353
        %vm355 = vweird.f32 %v348
        %vm356 = vweird.f32 %v349
        %vm357 = vmor %vm355, %vm356
        %v358 = vsel %vm357, %v349, %v354
        %v359 = vmul.f32 %v342, %v358
        %v360 = vld [vmem:[%s1] sm:$0x1]
        %v362 = vperm.slane %v360, 0
        %v364 = vmul.f32 %v359, %v362
        %v365 = vld [vmem:[%s2] sm:$0x1]
        %v367 = vperm.slane %v365, 0
        %v369 = vadd.f32 %v364, %v367
        %v370 = vmax.f32 %v369, 0.0
        %v371 = vld [vmem:[%s3] sm:$0xf]
        %v372 = vld [vmem:[%s3 + $0x4] sm:$0xf]
        %v373 = vld [vmem:[%s3 + $0x8] sm:$0xf]
        %v374 = vld [vmem:[%s3 + $0xc] sm:$0xf]
        %v375 = vpack.c.bf16 %v370, %v370
        %v376 = vld [vmem:[%s4] sm:$0x1]
        %v378 = vperm.slane %v376, 0
        %v384 = vunpack.c.l.b16 %v371
        %v385 = vunpack.c.l.b16 %v372
        %v386 = vunpack.c.l.b16 %v373
        %v387 = vunpack.c.l.b16 %v374
        %v388 = vpack.c.b16 %v385, %v384
        %v389 = vpack.c.b16 %v387, %v386
        %v393 = vsel %vm330, %v375, 0
        %395 = vmatpush.bf16.msra.mxu0 0
        %396 = vmatpush.bf16.msra.mxu0 0
        %397 = vmatpush.bf16.msra.mxu0 0
        %398 = vmatpush.bf16.msra.mxu0 0
        %399 = vmatpush.bf16.msra.mxu0 0
        %400 = vmatpush.bf16.msra.mxu0 0
        %401 = vmatpush.bf16.msra.mxu0 %v389
        %402 = vmatpush.bf16.msra.mxu0 %v388
        %403 = vmatmul.bf16.gmra.mxu0 %v393
        %v404 = vpop.f32.mrf.mxu0
        %v405 = vadd.f32 %v378, %v404
        %v406 = vpop.f32.mrf.mxu0
        %407 = vdwg.mxu0
        %vm408 = vcmask 523264
        %v409 = vsel %vm408, %v405, 0.0
        %410 = vadd.xlane.f32.xlu0 %v409
        %v411 = vpop.xlane.xlu0 %410
        %v412 = vrcp.pop 64.0
        %v413 = vmul.f32 64.0, %v412
        %v414 = vsub.f32 1.0, %v413
        %v415 = vmul.f32 %v412, %v414
        %v416 = vadd.f32 %v412, %v415
        %vm417 = vweird.f32 %v412
        %v418 = vsel %vm417, %v412, %v416
        %v419 = vmul.f32 %v411, %v418
        %v420 = vsub.f32 %v405, %v419
        %v421 = vmul.f32 %v420, %v420
        %v422 = vsel %vm408, %v421, 0.0
        %423 = vadd.xlane.f32.xlu0 %v422
        %v424 = vpop.xlane.xlu0 %423
        %v425 = vmul.f32 %v424, %v418
        %v426 = vadd.f32 %v425, 1e-05
        %v427 = vrsqrt.pop %v426
        %v428 = vmul.f32 %v427, %v426
        %v429 = vmul.f32 %v428, %v427
        %v430 = vmul.f32 0.5, %v429
        %v431 = vsub.f32 1.5, %v430
        %v432 = vmul.f32 %v427, %v431
        %vm433 = vweird.f32 %v426
        %vm434 = vweird.f32 %v427
        %vm435 = vmor %vm433, %vm434
        %v436 = vsel %vm435, %v427, %v432
        %v437 = vmul.f32 %v420, %v436
        %v438 = vld [vmem:[%s5] sm:$0x1]
        %v440 = vperm.slane %v438, 0
        %v442 = vmul.f32 %v437, %v440
        %v443 = vld [vmem:[%s6] sm:$0x1]
        %v445 = vperm.slane %v443, 0
        %v447 = vadd.f32 %v442, %v445
        %v448 = vmax.f32 %v447, 0.0
        %v449 = vld [vmem:[%s7] sm:$0xf]
        %v450 = vld [vmem:[%s7 + $0x4] sm:$0xf]
        %v451 = vld [vmem:[%s7 + $0x8] sm:$0xf]
        %v452 = vld [vmem:[%s7 + $0xc] sm:$0xf]
        %v453 = vld [vmem:[%s7 + $0x10] sm:$0xf]
        %v454 = vld [vmem:[%s7 + $0x14] sm:$0xf]
        %v455 = vld [vmem:[%s7 + $0x18] sm:$0xf]
        %v456 = vld [vmem:[%s7 + $0x1c] sm:$0xf]
        %v457 = vpack.c.bf16 %v448, %v448
        %v458 = vld [vmem:[%s8] sm:$0x1]
        %v460 = vperm.slane %v458, 0
        %v470 = vunpack.c.l.b16 %v449
        %v471 = vunpack.c.l.b16 %v450
        %v472 = vunpack.c.l.b16 %v451
        %v473 = vunpack.c.l.b16 %v452
        %v474 = vunpack.c.l.b16 %v453
        %v475 = vunpack.c.l.b16 %v454
        %v476 = vunpack.c.l.b16 %v455
        %v477 = vunpack.c.l.b16 %v456
        %v478 = vpack.c.b16 %v471, %v470
        %v479 = vpack.c.b16 %v473, %v472
        %v480 = vpack.c.b16 %v475, %v474
        %v481 = vpack.c.b16 %v477, %v476
        %v487 = vsel %vm408, %v457, 0
        %489 = vmatpush.bf16.msra.mxu0 0
        %490 = vmatpush.bf16.msra.mxu0 0
        %491 = vmatpush.bf16.msra.mxu0 0
        %492 = vmatpush.bf16.msra.mxu0 0
        %493 = vmatpush.bf16.msra.mxu0 %v481
        %494 = vmatpush.bf16.msra.mxu0 %v480
        %495 = vmatpush.bf16.msra.mxu0 %v479
        %496 = vmatpush.bf16.msra.mxu0 %v478
        %497 = vmatmul.bf16.gmra.mxu0 %v487
        %v498 = vpop.f32.mrf.mxu0
        %v499 = vadd.f32 %v460, %v498
        %v500 = vpop.f32.mrf.mxu0
        %501 = vdwg.mxu0
        %vm502 = vcmask 130048
        %503 = vst.msk [vmem:[%s323] sm:$0xff] %vm502, %v499
        %s504 = sand.u32 %s225, 1
        %s505 = scalar_lea.sflag [#allocation3], %s504
        %s506 = sand.u32 %s225, 1
        %s507 = smul.addr %s506, 8
        %s508 = scalar_lea.vmem [#allocation2], %s507
        // Predicated region
        $region57: #{deephead_forward.1} parent=55 // pred_check
          %p509 = pneg %p235
        $region58: #{deephead_forward.1} parent=55 // pred_check_branch
          %511 = sbr.rel (%p509) target = $region60
        $region59: #{deephead_forward.1} parent=55 // pred_region
          %513 = vsyncadd %s505, 0
          %s514 = smul.addr %s23, 8
          %s515 = scalar_lea.hbm %s9, %s514
          %s517 = sshll.u32 %s508, 4
          %s518 = int_to_ptr.vmem [resolvable:$true] %s517
          %s519 = sshll.u32 %s515, 4
          %s520 = int_to_ptr.hbm [resolvable:$true] %s519
          %522 = dma.vmem_to_hbm [thread:$0]  %s518, 128, %s520, %s505
        $region60: #{deephead_forward.1} parent=55 // pred_fallthru
          _
      $region56: #{deephead_forward.1} parent=5 // pred_fallthru
        _
      %p523 = scmp.le.s32.totalorder 2, %s18
      // Predicated region
      $region61: #{deephead_forward.1} parent=5 // pred_check
        %p524 = pneg %p523
      $region62: #{deephead_forward.1} parent=5 // pred_check_branch
        %526 = sbr.rel (%p524) target = $region64
      $region63: #{deephead_forward.1} parent=5 // pred_region
        %s527 = ssub.s32 %s18, 2
        // Predicated region
        $region65: #{deephead_forward.1} parent=63 // pred_check
          %p528 = pneg %p241
        $region66: #{deephead_forward.1} parent=63 // pred_check_branch
          %530 = sbr.rel (%p528) target = $region68
        $region67: #{deephead_forward.1} parent=63 // pred_region
          %s531 = sand.u32 %s226, 1
          %s532 = scalar_lea.sflag [#allocation3], %s531
          %s533 = sand.u32 %s226, 1
          %s534 = smul.addr %s533, 8
          %s535 = scalar_lea.vmem [#allocation2], %s534
          %537 = dma.done %s532, 128
        $region68: #{deephead_forward.1} parent=63 // pred_fallthru
          _
      $region64: #{deephead_forward.1} parent=5 // pred_fallthru
        _
    $region6: #{deephead_forward.1} parent=1 // loop_footer
      %s22 = sadd.s32 1, %s18
    $region7: #{deephead_forward.1} parent=1 // loop_footer_branch
      %17 = sbr.rel target = $region3
    $region8: #{deephead_forward.1} parent=1 // loop_exit
      _
    %538 = vsyncpa [#allocation3], 1
    %s539 = scalar_lea.sflag [#allocation3], 1
    %540 = vsyncpa %s539, 1

</llo_original>
